<compile_context>
chip_gen: v5e
topology: v5e:2x2
jax: 0.10.0
libtpu: 0.0.40
codegen_flags: <defaults>
</compile_context>

<pallas_src>
import jax
import jax.numpy as jnp
from jax import lax
from jax.experimental import pallas as pl
from jax.experimental.pallas import tpu as pltpu

_INV_SQRT2 = 0.7071067811865476


def _round_up(v, m):
    return ((v + m - 1) // m) * m


def _make_gelu_q_kernel(use_bf16_mxu):
    def kernel(scale_ref, x_ref, w_ref, bias_ref, o_ref, acc_ref):
        # scale_ref: SMEM f32[2] = [alpha, 0.5*beta]  (scalar-prefetched)
        # x_ref: int8 (tm, tk), w_ref: int8 (tk, tn), bias_ref: f32 (1, tn)
        # o_ref: int8 (tm, tn), acc_ref: VMEM (tm, tn) int32 (f32 on v7x)
        k = pl.program_id(2)

        @pl.when(k == 0)
        def _():
            acc_ref[...] = jnp.zeros_like(acc_ref)

        if use_bf16_mxu:
            # v7x MXU has no int8 path: int8 values are exact in bf16, and the
            # f32 accumulation is bit-exact while |sum| < 2^24 (K <~ 1000).
            # TODO(synk): split K accumulation on v7x if very large K is needed.
            acc_ref[...] += jnp.dot(
                x_ref[...].astype(jnp.bfloat16),
                w_ref[...].astype(jnp.bfloat16),
                preferred_element_type=jnp.float32)
        else:
            acc_ref[...] += jnp.dot(
                x_ref[...], w_ref[...], preferred_element_type=jnp.int32)

        @pl.when(k == pl.num_programs(2) - 1)
        def _():
            a = scale_ref[0]
            hb = scale_ref[1]                      # 0.5 * beta (pre-folded)
            y = acc_ref[...].astype(jnp.float32) * a + bias_ref[...]
            # exact (erf) GELU, matching torch.nn.functional.gelu default;
            # the 0.5 factor is folded into hb.
            g = y * (1.0 + lax.erf(y * _INV_SQRT2))
            q = jnp.round(g * hb)                  # round-half-even == __float2int_rn
            o_ref[...] = jnp.clip(q, -128.0, 127.0).astype(jnp.int8)

    return kernel


def w8a8_bfp32_ofp32_gelu_q(x, w_kn, bias, alpha, beta, *, tm=None, tn=None, tk=None):
    """x: int8 (..., K); w_kn: int8 (K, N) (already transposed once, not per call);
    bias: f32 (N,); returns int8 (..., N)."""
    *lead, K = x.shape
    K2, N = w_kn.shape
    assert K == K2
    x2 = x.reshape(-1, K)
    M = x2.shape[0]

    kind = jax.devices()[0].device_kind.lower()
    use_bf16_mxu = "v7" in kind          # v7x MXU: bf16/fp8 only, no int8

    # Per-generation default tiles (sweepable); all (32, 128)-aligned for int8.
    if "v5" in kind:
        dtm, dtn, dtk = 128, 256, 512    # 128-wide MXU, 16 MiB scoped VMEM default
    elif use_bf16_mxu:
        dtm, dtn, dtk = 256, 256, 512    # 64 MiB VMEM on v7x -> modest tiles
    else:
        dtm, dtn, dtk = 256, 512, 512    # v6e 256-wide MXU, 128 MiB VMEM
    tm = dtm if tm is None else tm
    tn = dtn if tn is None else tn
    tk = dtk if tk is None else tk

    # Clamp tiles to the (alignment-rounded) problem size.
    tm = min(tm, _round_up(M, 32))       # int8 sublane pack
    tn = min(tn, _round_up(N, 128))      # lane-dense int8 output stores
    tk = min(tk, _round_up(K, 128))      # lane dim of the activation tile

    Mp = _round_up(M, tm)
    Np = _round_up(N, tn)
    Kp = _round_up(K, tk)

    # Zero-pad to tile multiples (zeros contribute nothing to the dot; extra
    # rows/cols are sliced off below). Keeps every store unmasked.
    xp = x2 if (Mp == M and Kp == K) else jnp.pad(x2, ((0, Mp - M), (0, Kp - K)))
    wp = w_kn if (Kp == K and Np == N) else jnp.pad(w_kn, ((0, Kp - K), (0, Np - N)))
    bp = bias.astype(jnp.float32).reshape(1, N)
    if Np != N:
        bp = jnp.pad(bp, ((0, 0), (0, Np - N)))

    scales = jnp.stack([
        jnp.asarray(alpha, jnp.float32),
        jnp.asarray(0.5, jnp.float32) * jnp.asarray(beta, jnp.float32),
    ])

    acc_dtype = jnp.float32 if use_bf16_mxu else jnp.int32
    grid = (Mp // tm, Np // tn, Kp // tk)

    out = pl.pallas_call(
        _make_gelu_q_kernel(use_bf16_mxu),
        out_shape=jax.ShapeDtypeStruct((Mp, Np), jnp.int8),
        grid_spec=pltpu.PrefetchScalarGridSpec(
            num_scalar_prefetch=1,
            grid=grid,
            in_specs=[
                pl.BlockSpec((tm, tk), lambda i, j, k, s: (i, k)),
                pl.BlockSpec((tk, tn), lambda i, j, k, s: (k, j)),
                pl.BlockSpec((1, tn), lambda i, j, k, s: (0, j)),  # resident across k
            ],
            out_specs=pl.BlockSpec((tm, tn), lambda i, j, k, s: (i, j)),
            scratch_shapes=[pltpu.VMEM((tm, tn), acc_dtype)],
        ),
        compiler_params=pltpu.CompilerParams(
            dimension_semantics=("parallel", "parallel", "arbitrary")),
        cost_estimate=pl.CostEstimate(
            flops=2 * M * N * K,
            bytes_accessed=M * K + K * N + M * N + 4 * N,
            transcendentals=M * N),
    )(scales, xp, wp, bp)

    out = out[:M, :N]
    return out.reshape(*lead, N)


class W8A8BFP32OFP32GeLuQ:
    """JAX/Pallas port of triton_int.nn.fused.W8A8BFP32OFP32_GeLu_Q."""

    def __init__(self, in_features, out_features, alpha=1.0, beta=1.0, key=None):
        self.in_features = in_features
        self.out_features = out_features
        key = jax.random.PRNGKey(0) if key is None else key
        # torch.randint(-127, 127, (out, in), dtype=int8) -> values in [-127, 126]
        self.weight = jax.random.randint(
            key, (out_features, in_features), -127, 127, dtype=jnp.int8)
        # Pre-transpose ONCE to the MXU-friendly (K, N) layout (no per-call .T).
        self._w_kn = jnp.asarray(self.weight.T)
        self.bias = jnp.zeros((out_features,), jnp.float32)
        self.a = jnp.float32(alpha)
        self.b = jnp.float32(beta)

    def __call__(self, x):
        return w8a8_bfp32_ofp32_gelu_q(x, self._w_kn, self.bias, self.a, self.b)


if __name__ == "__main__":
    key = jax.random.PRNGKey(0)
    kx, kw, kb = jax.random.split(key, 3)

    B, S, K, N = 2, 8, 64, 128       # batch, seq, in_features, out_features
    x = jax.random.randint(kx, (B, S, K), -127, 127, dtype=jnp.int8)

    mod = W8A8BFP32OFP32GeLuQ(K, N, alpha=0.02, beta=4.0, key=kw)
    # __init__ uses zero bias; use a small deterministic nonzero bias to exercise the add.
    mod.bias = 0.5 * jax.random.normal(kb, (N,), dtype=jnp.float32)

    y = mod(x)
    jax.block_until_ready(y)

    # Pure-JAX reference for sanity.
    acc = jnp.dot(x.reshape(-1, K).astype(jnp.int32), mod.weight.T.astype(jnp.int32))
    yr = acc.astype(jnp.float32) * mod.a + mod.bias[None, :]
    gr = 0.5 * yr * (1.0 + lax.erf(yr * _INV_SQRT2))
    ref = jnp.clip(jnp.round(gr * mod.b), -128, 127).astype(jnp.int8).reshape(B, S, N)

    assert y.shape == (B, S, N) and y.dtype == jnp.int8
    # Allow <=1 LSB slack for erf/rounding differences between Mosaic and XLA.
    assert int(jnp.max(jnp.abs(y.astype(jnp.int32) - ref.astype(jnp.int32)))) <= 1
    print("KERNEL_OK")
</pallas_src>

<mosaic_0001>
module attributes {stable_mosaic.version = 11 : i64} {
  func.func @kernel(%arg0: i32, %arg1: i32, %arg2: i32, %arg3: memref<2xf32, #tpu.memory_space<smem>>, %arg4: memref<32x128xi8, #tpu.memory_space<vmem>>, %arg5: memref<128x128xi8, #tpu.memory_space<vmem>>, %arg6: memref<1x128xf32, #tpu.memory_space<vmem>>, %arg7: memref<32x128xi8, #tpu.memory_space<vmem>>, %arg8: memref<32x128xi32, #tpu.memory_space<vmem>>) attributes {dimension_semantics = [#tpu.dimension_semantics<parallel>, #tpu.dimension_semantics<parallel>, #tpu.dimension_semantics<arbitrary>], iteration_bounds = array<i64: 1, 1, 1>, scalar_prefetch = 1 : i64, scratch_operands = 1 : i64, tpu.core_type = #tpu.core_type<tc>, window_params = [{transform_indices = @transform_0, window_bounds = array<i64: 32, 128>}, {transform_indices = @transform_1, window_bounds = array<i64: 128, 128>}, {transform_indices = @transform_2, window_bounds = array<i64: 1, 128>}, {transform_indices = @transform_3, window_bounds = array<i64: 32, 128>}]} {
    %c0_i32 = arith.constant 0 : i32
    %0 = arith.cmpi eq, %arg2, %c0_i32 : i32
    %1 = arith.extui %0 : i1 to i32
    %c0_i32_0 = arith.constant 0 : i32
    %2 = arith.cmpi ne, %1, %c0_i32_0 : i32
    scf.if %2 {
      %c0_i32_10 = arith.constant 0 : i32
      %12 = vector.broadcast %c0_i32_10 : i32 to vector<32x128xi32>
      %c0_11 = arith.constant 0 : index
      %c0_12 = arith.constant 0 : index
      %13 = vector.load %arg8[%c0_11, %c0_12] : memref<32x128xi32, #tpu.memory_space<vmem>>, vector<32x128xi32>
      tpu.vector_store %arg8[%c0_11, %c0_12], %12 {strides = array<i32>} : memref<32x128xi32, #tpu.memory_space<vmem>>, vector<32x128xi32>,
    } else {
    }
    %c0 = arith.constant 0 : index
    %c0_1 = arith.constant 0 : index
    %3 = vector.load %arg8[%c0, %c0_1] : memref<32x128xi32, #tpu.memory_space<vmem>>, vector<32x128xi32>
    %c0_2 = arith.constant 0 : index
    %c0_3 = arith.constant 0 : index
    %4 = vector.load %arg4[%c0_2, %c0_3] : memref<32x128xi8, #tpu.memory_space<vmem>>, vector<32x128xi8>
    %c0_4 = arith.constant 0 : index
    %c0_5 = arith.constant 0 : index
    %5 = vector.load %arg5[%c0_4, %c0_5] : memref<128x128xi8, #tpu.memory_space<vmem>>, vector<128x128xi8>
    %cst = arith.constant dense<0> : vector<32x128xi32>
    %6 = tpu.matmul %4, %5, %cst {dimension_numbers = #tpu.dot_dimension_numbers<[1], [0], [0], [1], [0, 0, 1, 1], [], []>} : vector<32x128xi8>, vector<128x128xi8>, vector<32x128xi32> -> vector<32x128xi32>
    %7 = arith.addi %3, %6 : vector<32x128xi32>
    %c0_6 = arith.constant 0 : index
    %c0_7 = arith.constant 0 : index
    %8 = vector.load %arg8[%c0_6, %c0_7] : memref<32x128xi32, #tpu.memory_space<vmem>>, vector<32x128xi32>
    tpu.vector_store %arg8[%c0_6, %c0_7], %7 {strides = array<i32>} : memref<32x128xi32, #tpu.memory_space<vmem>>, vector<32x128xi32>,
    %c0_i32_8 = arith.constant 0 : i32
    %9 = arith.cmpi eq, %arg2, %c0_i32_8 : i32
    %10 = arith.extui %9 : i1 to i32
    %c0_i32_9 = arith.constant 0 : i32
    %11 = arith.cmpi ne, %10, %c0_i32_9 : i32
    scf.if %11 {
      %c0_10 = arith.constant 0 : index
      %12 = memref.load %arg3[%c0_10] : memref<2xf32, #tpu.memory_space<smem>>
      %c1 = arith.constant 1 : index
      %13 = memref.load %arg3[%c1] : memref<2xf32, #tpu.memory_space<smem>>
      %c0_11 = arith.constant 0 : index
      %c0_12 = arith.constant 0 : index
      %14 = vector.load %arg8[%c0_11, %c0_12] : memref<32x128xi32, #tpu.memory_space<vmem>>, vector<32x128xi32>
      %15 = arith.sitofp %14 : vector<32x128xi32> to vector<32x128xf32>
      %16 = vector.broadcast %12 : f32 to vector<32x128xf32>
      %17 = arith.mulf %15, %16 : vector<32x128xf32>
      %c0_13 = arith.constant 0 : index
      %c0_14 = arith.constant 0 : index
      %18 = vector.load %arg6[%c0_13, %c0_14] : memref<1x128xf32, #tpu.memory_space<vmem>>, vector<1x128xf32>
      %19 = vector.broadcast %18 : vector<1x128xf32> to vector<32x128xf32>
      %20 = arith.addf %17, %19 : vector<32x128xf32>
      %cst_15 = arith.constant 0.707106769 : f32
      %21 = vector.broadcast %cst_15 : f32 to vector<32x128xf32>
      %22 = arith.mulf %20, %21 : vector<32x128xf32>
      %23 = math.erf %22 : vector<32x128xf32>
      %cst_16 = arith.constant 1.000000e+00 : f32
      %24 = vector.broadcast %cst_16 : f32 to vector<32x128xf32>
      %25 = arith.addf %24, %23 : vector<32x128xf32>
      %26 = arith.mulf %20, %25 : vector<32x128xf32>
      %27 = vector.broadcast %13 : f32 to vector<32x128xf32>
      %28 = arith.mulf %26, %27 : vector<32x128xf32>
      %29 = math.roundeven %28 : vector<32x128xf32>
      %cst_17 = arith.constant -1.280000e+02 : f32
      %cst_18 = arith.constant 1.270000e+02 : f32
      %30 = vector.broadcast %cst_17 : f32 to vector<32x128xf32>
      %31 = arith.maximumf %30, %29 : vector<32x128xf32>
      %32 = vector.broadcast %cst_18 : f32 to vector<32x128xf32>
      %33 = arith.minimumf %32, %31 : vector<32x128xf32>
      %34 = arith.fptosi %33 : vector<32x128xf32> to vector<32x128xi8>
      %c0_19 = arith.constant 0 : index
      %c0_20 = arith.constant 0 : index
      %35 = vector.load %arg7[%c0_19, %c0_20] : memref<32x128xi8, #tpu.memory_space<vmem>>, vector<32x128xi8>
      tpu.vector_store %arg7[%c0_19, %c0_20], %34 {strides = array<i32>} : memref<32x128xi8, #tpu.memory_space<vmem>>, vector<32x128xi8>,
    } else {
    }
    return
  }
  func.func @transform_0(%arg0: i32, %arg1: i32, %arg2: i32, %arg3: memref<2xf32, #tpu.memory_space<smem>>) -> (i32, i32) {
    %c0_i32 = arith.constant 0 : i32
    return %arg0, %arg2 : i32, i32
  }
  func.func @transform_1(%arg0: i32, %arg1: i32, %arg2: i32, %arg3: memref<2xf32, #tpu.memory_space<smem>>) -> (i32, i32) {
    %c0_i32 = arith.constant 0 : i32
    return %arg2, %arg1 : i32, i32
  }
  func.func @transform_2(%arg0: i32, %arg1: i32, %arg2: i32, %arg3: memref<2xf32, #tpu.memory_space<smem>>) -> (i32, i32) {
    %c0_i32 = arith.constant 0 : i32
    %c0_i32_0 = arith.constant 0 : i32
    return %c0_i32, %arg1 : i32, i32
  }
  func.func @transform_3(%arg0: i32, %arg1: i32, %arg2: i32, %arg3: memref<2xf32, #tpu.memory_space<smem>>) -> (i32, i32) {
    %c0_i32 = arith.constant 0 : i32
    return %arg0, %arg1 : i32, i32
  }
}

</mosaic_0001>

<llo_original>
// kernel: tpu_custom_call.1
$region0: #{tpu_custom_call.1}
  #allocation0 [shape = 'u32[]', space=smem, size = 0x4, offset = 0x4, fixed_abs, tag = 'smem constant byte address 0x4 - core index']
  #allocation1 [shape = 'u32[72,128]{1,0:T(1,128)}', space=vmem, size = 0x9000, scoped, tag = 'internal scratch']
  #allocation2 [shape = 's32[32,128]{1,0:T(8,128)}', space=vmem, size = 0x4000, scoped, tag = 'scratch operand']
  #allocation3 [shape = 's32[1]{0}', space=sflag, size = 0x4, scoped, tag = 'scoped memory for tpu_custom_call.1']
  #allocation4 [shape = 'u8[512]{0}', space=smem, size = 0x200, scoped, tag = 'prefetched SMEM operand 0']
  %s0 = inlined_call_operand.hbm [shape: f32[2], index: 0, kind: input, shape index: {}]
  %s1 = inlined_call_operand.hbm [shape: s8[32,128], index: 1, kind: input, shape index: {}]
  %s2 = inlined_call_operand.hbm [shape: s8[128,128], index: 2, kind: input, shape index: {}]
  %s3 = inlined_call_operand.vmem [shape: f32[1,128], index: 3, kind: input, shape index: {}]
  %s4 = inlined_call_operand.hbm [shape: s8[32,128], index: 4, kind: output, shape index: {}]
  %s5 = sld [smem:[#allocation0]]
  $region38: #{tpu_custom_call.1} parent=0
    _
  %s7 = ssub.s32 1, %s5
  %s8 = scalar_select 0, %s7, %s5
  %s10 = sshll.u32 %s0, 4
  %s11 = int_to_ptr.hbm [resolvable:$true] %s10
  %13 = dma.hbm_to_smem %s11, 16, [#allocation4], [#allocation3]
  %15 = dma.done [#allocation3], 16
  %16 = sfence
  $region1: #{tpu_custom_call.1} parent=0
    #allocation5 [shape = 'u8[4096]{0}', space=vmem, size = 0x1000, scoped, tag = 'input window, operand 1, single buffered']
    #allocation6 [shape = 's32[1]{0}', space=sflag, size = 0x4, scoped, tag = 'scoped memory for tpu_custom_call.1']
    #allocation7 [shape = 's32[1]{0}', space=sflag, size = 0x4, scoped, tag = 'scoped memory for tpu_custom_call.1']
    #allocation8 [shape = 'u8[16384]{0}', space=vmem, size = 0x4000, scoped, tag = 'input window, operand 2, single buffered']
    #allocation9 [shape = 's32[1]{0}', space=sflag, size = 0x4, scoped, tag = 'scoped memory for tpu_custom_call.1']
    #allocation10 [shape = 'u8[4096]{0}', space=vmem, size = 0x1000, scoped, tag = 'output window, operand 0, single buffered']
    %17 = vsyncpa [#allocation6], 0
    %18 = vsyncpa [#allocation9], 0
    %19 = vsyncpa [#allocation7], 0
    // Predicated region
    $region2: #{tpu_custom_call.1} parent=1 // pred_check
      _
    $region3: #{tpu_custom_call.1} parent=1 // pred_check_branch
      %21 = sbr.rel (0) target = $region5
    $region4: #{tpu_custom_call.1} parent=1 // pred_region
      %23 = vsyncadd [#allocation6], 0
      %s25 = sshll.u32 %s1, 4
      %s26 = int_to_ptr.hbm [resolvable:$true] %s25
      %s27 = sshll.u32 [#allocation5], 4
      %s28 = int_to_ptr.vmem [resolvable:$true] %s27
      %30 = dma.hbm_to_vmem [thread:$0]  %s26, 128, %s28, [#allocation6]
    $region5: #{tpu_custom_call.1} parent=1 // pred_fallthru
      _
    // Predicated region
    $region6: #{tpu_custom_call.1} parent=1 // pred_check
      _
    $region7: #{tpu_custom_call.1} parent=1 // pred_check_branch
      %32 = sbr.rel (0) target = $region9
    $region8: #{tpu_custom_call.1} parent=1 // pred_region
      %34 = vsyncadd [#allocation9], 0
      %s35 = sshll.u32 %s2, 4
      %s36 = int_to_ptr.hbm [resolvable:$true] %s35
      %s37 = sshll.u32 [#allocation8], 4
      %s38 = int_to_ptr.vmem [resolvable:$true] %s37
      %43 = dma.hbm_to_vmem [thread:$0]  %s36, 512, %s38, [#allocation9], 128, 128, 8
    $region9: #{tpu_custom_call.1} parent=1 // pred_fallthru
      _
    // Predicated region
    $region10: #{tpu_custom_call.1} parent=1 // pred_check
      _
    $region11: #{tpu_custom_call.1} parent=1 // pred_check_branch
      %45 = sbr.rel (0) target = $region13
    $region12: #{tpu_custom_call.1} parent=1 // pred_region
      _
    $region13: #{tpu_custom_call.1} parent=1 // pred_fallthru
      _
    // Predicated region
    $region14: #{tpu_custom_call.1} parent=1 // pred_check
      _
    $region15: #{tpu_custom_call.1} parent=1 // pred_check_branch
      %47 = sbr.rel (0) target = $region17
    $region16: #{tpu_custom_call.1} parent=1 // pred_region
      %49 = dma.done [#allocation6], 128
    $region17: #{tpu_custom_call.1} parent=1 // pred_fallthru
      _
    // Predicated region
    $region18: #{tpu_custom_call.1} parent=1 // pred_check
      _
    $region19: #{tpu_custom_call.1} parent=1 // pred_check_branch
      %51 = sbr.rel (0) target = $region21
    $region20: #{tpu_custom_call.1} parent=1 // pred_region
      %53 = dma.done [#allocation9], 512
    $region21: #{tpu_custom_call.1} parent=1 // pred_fallthru
      _
    %p54 = scmp.eq.s32.totalorder 0, 0
    // Predicated region
    $region22: #{tpu_custom_call.1} parent=1 // pred_check
      %p55 = pneg %p54
    $region23: #{tpu_custom_call.1} parent=1 // pred_check_branch
      %57 = sbr.rel (%p55) target = $region25
    $region24: #{tpu_custom_call.1} parent=1 // pred_region
      %58 = vst [vmem:[#allocation2] sm:$0xff] 0
      %59 = vst [vmem:[#allocation2 + $0x8] sm:$0xff] 0
      %60 = vst [vmem:[#allocation2 + $0x10] sm:$0xff] 0
      %61 = vst [vmem:[#allocation2 + $0x18] sm:$0xff] 0
    $region25: #{tpu_custom_call.1} parent=1 // pred_fallthru
      _
    %v62 = vld [vmem:[#allocation2] sm:$0xff]
    %v63 = vld [vmem:[#allocation2 + $0x8] sm:$0xff]
    %v64 = vld [vmem:[#allocation2 + $0x10] sm:$0xff]
    %v65 = vld [vmem:[#allocation2 + $0x18] sm:$0xff]
    %v66 = vld [vmem:[#allocation5] sm:$0xff]
    %v67 = vld [vmem:[#allocation8] sm:$0xff]
    %v68 = vld [vmem:[#allocation8 + $0x8] sm:$0xff]
    %v69 = vld [vmem:[#allocation8 + $0x10] sm:$0xff]
    %v70 = vld [vmem:[#allocation8 + $0x18] sm:$0xff]
    %71 = vmatpush.s8.msra.mxu0 %v70
    %72 = vmatpush.s8.msra.mxu0 %v69
    %73 = vmatpush.s8.msra.mxu0 %v68
    %74 = vmatpush.s8.msra.mxu0 %v67
    %75 = vmatmul.s8.gmra.mxu0 %v66
    %v76 = vpop.s32.mrf.mxu0
    %v77 = vadd.s32 0, %v76
    %v78 = vpop.s32.mrf.mxu0
    %v79 = vadd.s32 0, %v78
    %v80 = vpop.s32.mrf.mxu0
    %v81 = vadd.s32 0, %v80
    %v82 = vpop.s32.mrf.mxu0
    %v83 = vadd.s32 0, %v82
    %84 = vdwg.mxu0
    %v85 = vadd.s32 %v62, %v77
    %v86 = vadd.s32 %v63, %v79
    %v87 = vadd.s32 %v64, %v81
    %v88 = vadd.s32 %v65, %v83
    %89 = vst [vmem:[#allocation2] sm:$0xff] %v85
    %90 = vst [vmem:[#allocation2 + $0x8] sm:$0xff] %v86
    %91 = vst [vmem:[#allocation2 + $0x10] sm:$0xff] %v87
    %92 = vst [vmem:[#allocation2 + $0x18] sm:$0xff] %v88
    // Predicated region
    $region26: #{tpu_custom_call.1} parent=1 // pred_check
      %p93 = pneg %p54
    $region27: #{tpu_custom_call.1} parent=1 // pred_check_branch
      %95 = sbr.rel (%p93) target = $region29
    $region28: #{tpu_custom_call.1} parent=1 // pred_region
      %s96 = sld [smem:[#allocation4]]
      %s97 = sld [smem:[#allocation4 + $0x1]]
      %v98 = vld [vmem:[#allocation2] sm:$0xff]
      %v99 = vld [vmem:[#allocation2 + $0x8] sm:$0xff]
      %v100 = vld [vmem:[#allocation2 + $0x10] sm:$0xff]
      %v101 = vld [vmem:[#allocation2 + $0x18] sm:$0xff]
      %v102 = vcvt.s32.f32 %v98
      %v103 = vcvt.s32.f32 %v99
      %v104 = vcvt.s32.f32 %v100
      %v105 = vcvt.s32.f32 %v101
      %v106 = vstv %s96
      %v107 = vmul.f32 %v102, %v106
      %v108 = vmul.f32 %v103, %v106
      %v109 = vmul.f32 %v104, %v106
      %v110 = vmul.f32 %v105, %v106
      %v111 = vld [vmem:[%s3] sm:$0x1]
      %v113 = vperm.slane %v111, 0
      %v115 = vadd.f32 %v107, %v113
      %v116 = vadd.f32 %v108, %v113
      %v117 = vadd.f32 %v109, %v113
      %v118 = vadd.f32 %v110, %v113
      %v119 = vmul.f32 %v115, 0.70710677
      %v120 = vmul.f32 %v116, 0.70710677
      %v121 = vmul.f32 %v117, 0.70710677
      %v122 = vmul.f32 %v118, 0.70710677
      %v123 = vmul.f32 %v119, %v119
      %v124 = vmin.f32 16.0, %v123
      %v125 = vmul.f32 %v124, 2.1237322e-06
      %v126 = vadd.f32 %v125, 0.00028619796
      %v127 = vmul.f32 %v124, %v126
      %v128 = vadd.f32 %v127, 0.0036580483
      %v129 = vmul.f32 %v124, %v128
      %v130 = vadd.f32 %v129, 0.05243302
      %v131 = vmul.f32 %v124, %v130
      %v132 = vadd.f32 %v131, 0.18741608
      %v133 = vmul.f32 %v124, %v132
      %v134 = vadd.f32 %v133, 1.1283791
      %v135 = vmul.f32 %v119, %v134
      %v136 = vmul.f32 %v124, 3.8918573e-05
      %v137 = vadd.f32 %v136, 0.001143296
      %v138 = vmul.f32 %v124, %v137
      %v139 = vadd.f32 %v138, 0.014752088
      %v140 = vmul.f32 %v124, %v139
      %v141 = vadd.f32 %v140, 0.112945676
      %v142 = vmul.f32 %v124, %v141
      %v143 = vadd.f32 %v142, 0.4994258
      %v144 = vmul.f32 %v124, %v143
      %v145 = vadd.f32 %v144, 1.0
      %v146 = vrcp.pop %v145
      %v147 = vmul.f32 %v145, %v146
      %v148 = vsub.f32 1.0, %v147
      %v149 = vmul.f32 %v146, %v148
      %v150 = vadd.f32 %v146, %v149
      %vm151 = vweird.f32 %v145
      %vm152 = vweird.f32 %v146
      %vm153 = vmor %vm151, %vm152
      %v154 = vsel %vm153, %v146, %v150
      %v155 = vand.u32 2147483647, %v145
      %vm156 = vcmp.eq.f32.partialorder %v155, 8.507059e+37
      %v157 = vand.u32 %v145, 2147483648
      %v158 = vor.u32 1.1754944e-38, %v157
      %v159 = vsel %vm156, %v158, %v154
      %v160 = vmul.f32 %v135, %v159
      %v161 = vmin.f32 %v160, 1.0
      %v162 = vmax.f32 %v161, -1.0
      %v163 = vmul.f32 %v120, %v120
      %v164 = vmin.f32 16.0, %v163
      %v165 = vmul.f32 %v164, 2.1237322e-06
      %v166 = vadd.f32 %v165, 0.00028619796
      %v167 = vmul.f32 %v164, %v166
      %v168 = vadd.f32 %v167, 0.0036580483
      %v169 = vmul.f32 %v164, %v168
      %v170 = vadd.f32 %v169, 0.05243302
      %v171 = vmul.f32 %v164, %v170
      %v172 = vadd.f32 %v171, 0.18741608
      %v173 = vmul.f32 %v164, %v172
      %v174 = vadd.f32 %v173, 1.1283791
      %v175 = vmul.f32 %v120, %v174
      %v176 = vmul.f32 %v164, 3.8918573e-05
      %v177 = vadd.f32 %v176, 0.001143296
      %v178 = vmul.f32 %v164, %v177
      %v179 = vadd.f32 %v178, 0.014752088
      %v180 = vmul.f32 %v164, %v179
      %v181 = vadd.f32 %v180, 0.112945676
      %v182 = vmul.f32 %v164, %v181
      %v183 = vadd.f32 %v182, 0.4994258
      %v184 = vmul.f32 %v164, %v183
      %v185 = vadd.f32 %v184, 1.0
      %v186 = vrcp.pop %v185
      %v187 = vmul.f32 %v185, %v186
      %v188 = vsub.f32 1.0, %v187
      %v189 = vmul.f32 %v186, %v188
      %v190 = vadd.f32 %v186, %v189
      %vm191 = vweird.f32 %v185
      %vm192 = vweird.f32 %v186
      %vm193 = vmor %vm191, %vm192
      %v194 = vsel %vm193, %v186, %v190
      %v195 = vand.u32 2147483647, %v185
      %vm196 = vcmp.eq.f32.partialorder %v195, 8.507059e+37
      %v197 = vand.u32 %v185, 2147483648
      %v198 = vor.u32 1.1754944e-38, %v197
      %v199 = vsel %vm196, %v198, %v194
      %v200 = vmul.f32 %v175, %v199
      %v201 = vmin.f32 %v200, 1.0
      %v202 = vmax.f32 %v201, -1.0
      %v203 = vmul.f32 %v121, %v121
      %v204 = vmin.f32 16.0, %v203
      %v205 = vmul.f32 %v204, 2.1237322e-06
      %v206 = vadd.f32 %v205, 0.00028619796
      %v207 = vmul.f32 %v204, %v206
      %v208 = vadd.f32 %v207, 0.0036580483
      %v209 = vmul.f32 %v204, %v208
      %v210 = vadd.f32 %v209, 0.05243302
      %v211 = vmul.f32 %v204, %v210
      %v212 = vadd.f32 %v211, 0.18741608
      %v213 = vmul.f32 %v204, %v212
      %v214 = vadd.f32 %v213, 1.1283791
      %v215 = vmul.f32 %v121, %v214
      %v216 = vmul.f32 %v204, 3.8918573e-05
      %v217 = vadd.f32 %v216, 0.001143296
      %v218 = vmul.f32 %v204, %v217
      %v219 = vadd.f32 %v218, 0.014752088
      %v220 = vmul.f32 %v204, %v219
      %v221 = vadd.f32 %v220, 0.112945676
      %v222 = vmul.f32 %v204, %v221
      %v223 = vadd.f32 %v222, 0.4994258
      %v224 = vmul.f32 %v204, %v223
      %v225 = vadd.f32 %v224, 1.0
      %v226 = vrcp.pop %v225
      %v227 = vmul.f32 %v225, %v226
      %v228 = vsub.f32 1.0, %v227
      %v229 = vmul.f32 %v226, %v228
      %v230 = vadd.f32 %v226, %v229
      %vm231 = vweird.f32 %v225
      %vm232 = vweird.f32 %v226
      %vm233 = vmor %vm231, %vm232
      %v234 = vsel %vm233, %v226, %v230
      %v235 = vand.u32 2147483647, %v225
      %vm236 = vcmp.eq.f32.partialorder %v235, 8.507059e+37
      %v237 = vand.u32 %v225, 2147483648
      %v238 = vor.u32 1.1754944e-38, %v237
      %v239 = vsel %vm236, %v238, %v234
      %v240 = vmul.f32 %v215, %v239
      %v241 = vmin.f32 %v240, 1.0
      %v242 = vmax.f32 %v241, -1.0
      %v243 = vmul.f32 %v122, %v122
      %v244 = vmin.f32 16.0, %v243
      %v245 = vmul.f32 %v244, 2.1237322e-06
      %v246 = vadd.f32 %v245, 0.00028619796
      %v247 = vmul.f32 %v244, %v246
      %v248 = vadd.f32 %v247, 0.0036580483
      %v249 = vmul.f32 %v244, %v248
      %v250 = vadd.f32 %v249, 0.05243302
      %v251 = vmul.f32 %v244, %v250
      %v252 = vadd.f32 %v251, 0.18741608
      %v253 = vmul.f32 %v244, %v252
      %v254 = vadd.f32 %v253, 1.1283791
      %v255 = vmul.f32 %v122, %v254
      %v256 = vmul.f32 %v244, 3.8918573e-05
      %v257 = vadd.f32 %v256, 0.001143296
      %v258 = vmul.f32 %v244, %v257
      %v259 = vadd.f32 %v258, 0.014752088
      %v260 = vmul.f32 %v244, %v259
      %v261 = vadd.f32 %v260, 0.112945676
      %v262 = vmul.f32 %v244, %v261
      %v263 = vadd.f32 %v262, 0.4994258
      %v264 = vmul.f32 %v244, %v263
      %v265 = vadd.f32 %v264, 1.0
      %v266 = vrcp.pop %v265
      %v267 = vmul.f32 %v265, %v266
      %v268 = vsub.f32 1.0, %v267
      %v269 = vmul.f32 %v266, %v268
      %v270 = vadd.f32 %v266, %v269
      %vm271 = vweird.f32 %v265
      %vm272 = vweird.f32 %v266
      %vm273 = vmor %vm271, %vm272
      %v274 = vsel %vm273, %v266, %v270
      %v275 = vand.u32 2147483647, %v265
      %vm276 = vcmp.eq.f32.partialorder %v275, 8.507059e+37
      %v277 = vand.u32 %v265, 2147483648
      %v278 = vor.u32 1.1754944e-38, %v277
      %v279 = vsel %vm276, %v278, %v274
      %v280 = vmul.f32 %v255, %v279
      %v281 = vmin.f32 %v280, 1.0
      %v282 = vmax.f32 %v281, -1.0
      %v283 = vadd.f32 %v162, 1.0
      %v284 = vadd.f32 %v202, 1.0
      %v285 = vadd.f32 %v242, 1.0
      %v286 = vadd.f32 %v282, 1.0
      %v287 = vmul.f32 %v115, %v283
      %v288 = vmul.f32 %v116, %v284
      %v289 = vmul.f32 %v117, %v285
      %v290 = vmul.f32 %v118, %v286
      %v291 = vstv %s97
      %v292 = vmul.f32 %v287, %v291
      %v293 = vmul.f32 %v288, %v291
      %v294 = vmul.f32 %v289, %v291
      %v295 = vmul.f32 %v290, %v291
      %v296 = vround.ne.pseudo %v292
      %v297 = vround.ne.pseudo %v293
      %v298 = vround.ne.pseudo %v294
      %v299 = vround.ne.pseudo %v295
      %v300 = vmax.f32 %v296, -128.0
      %v301 = vmax.f32 %v297, -128.0
      %v302 = vmax.f32 %v298, -128.0
      %v303 = vmax.f32 %v299, -128.0
      %v304 = vmin.f32 %v300, 127.0
      %v305 = vmin.f32 %v301, 127.0
      %v306 = vmin.f32 %v302, 127.0
      %v307 = vmin.f32 %v303, 127.0
      %v308 = vmax.f32 %v304, -128.0
      %v309 = vmax.f32 %v305, -128.0
      %v310 = vmax.f32 %v306, -128.0
      %v311 = vmax.f32 %v307, -128.0
      %v312 = vmin.f32 %v308, 127.0
      %v313 = vmin.f32 %v309, 127.0
      %v314 = vmin.f32 %v310, 127.0
      %v315 = vmin.f32 %v311, 127.0
      %v316 = vcvt.f32.s32.to.zero.pseudo %v312
      %v317 = vcvt.f32.s32.to.zero.pseudo %v313
      %v318 = vcvt.f32.s32.to.zero.pseudo %v314
      %v319 = vcvt.f32.s32.to.zero.pseudo %v315
      %v320 = vpack.c.b16 %v317, %v316
      %v321 = vpack.c.b16 %v319, %v318
      %v322 = vpack.c.b8 %v321, %v320
      %323 = vst [vmem:[#allocation10] sm:$0xff] %v322
    $region29: #{tpu_custom_call.1} parent=1 // pred_fallthru
      _
    // Predicated region
    $region30: #{tpu_custom_call.1} parent=1 // pred_check
      _
    $region31: #{tpu_custom_call.1} parent=1 // pred_check_branch
      %325 = sbr.rel (0) target = $region33
    $region32: #{tpu_custom_call.1} parent=1 // pred_region
      %327 = vsyncadd [#allocation7], 0
      %s329 = sshll.u32 [#allocation10], 4
      %s330 = int_to_ptr.vmem [resolvable:$true] %s329
      %s331 = sshll.u32 %s4, 4
      %s332 = int_to_ptr.hbm [resolvable:$true] %s331
      %334 = dma.vmem_to_hbm [thread:$0]  %s330, 128, %s332, [#allocation7]
    $region33: #{tpu_custom_call.1} parent=1 // pred_fallthru
      _
    // Predicated region
    $region34: #{tpu_custom_call.1} parent=1 // pred_check
      _
    $region35: #{tpu_custom_call.1} parent=1 // pred_check_branch
      %336 = sbr.rel (0) target = $region37
    $region36: #{tpu_custom_call.1} parent=1 // pred_region
      %338 = dma.done [#allocation7], 128
    $region37: #{tpu_custom_call.1} parent=1 // pred_fallthru
      _
    %339 = vsyncpa [#allocation6], 1
    %340 = vsyncpa [#allocation9], 1
    %341 = vsyncpa [#allocation7], 1

</llo_original>
